<compile_context>
chip_gen: v5e
topology: v5e:2x2
jax: 0.10.0
libtpu: 0.0.40
codegen_flags: <defaults>
</compile_context>

<pallas_src>
import functools
import math

import jax
import jax.numpy as jnp
from jax.experimental import pallas as pl
from jax.experimental.pallas import tpu as pltpu

_LANES = 128
_SUBLANES = 8
_TQ = 8  # queries per grid step in the resident-table fast path


def _vmem_capacity_bytes():
    try:
        return int(pltpu.get_tpu_info().vmem_capacity_bytes)
    except Exception:
        return 64 * 1024 * 1024  # conservative default (v7x per-TC VMEM)


def _resident_kernel(i0_ref, w_ref, table_ref, out_ref, *, tq):
    # i0_ref   : SMEM (T_pad,) int32 -- clamped "last sample" ids
    # w_ref    : SMEM (T_pad,) f32   -- weight of the "last" sample
    # table_ref: VMEM (N, R, 128)    -- whole excitation table (resident)
    # out_ref  : VMEM (tq, R, 128)
    base = pl.program_id(0) * tq
    for j in range(tq):  # static unroll; tq is small
        q = base + j
        i0 = i0_ref[q]
        w = w_ref[q]
        a = table_ref[i0].astype(jnp.float32)       # (R, 128)
        b = table_ref[i0 + 1].astype(jnp.float32)   # (R, 128)
        out_ref[j] = (w * a + (jnp.float32(1.0) - w) * b).astype(out_ref.dtype)


def _stream_kernel(i0_ref, w_ref, row0_ref, row1_ref, out_ref):
    # Streaming fallback: rows fetched by data-dependent index_maps.
    q = pl.program_id(0)
    w = w_ref[q]
    a = row0_ref[...].astype(jnp.float32)
    b = row1_ref[...].astype(jnp.float32)
    out_ref[...] = (w * a + (jnp.float32(1.0) - w) * b).astype(out_ref.dtype)


def excitation_linear_interp(t, time, excitation_data, *,
                             vmem_table_budget_bytes=None):
    """Interpolate excitation_data (N, minibatch, feat...) at time(s) t.

    t may be a scalar (torch forward signature) or a (T,) vector of query
    times. Returns (minibatch, feat...) for scalar t, (T, minibatch, feat...)
    otherwise.
    """
    data = jnp.asarray(excitation_data)
    time = jnp.asarray(time, jnp.float32)
    N = data.shape[0]
    trailing = data.shape[1:]                        # (minibatch, feat...)
    BF = int(math.prod(trailing))
    BF_pad = ((BF + _LANES - 1) // _LANES) * _LANES
    R = BF_pad // _LANES
    itemsize = jnp.dtype(data.dtype).itemsize

    scalar_t = (jnp.ndim(t) == 0)
    t_arr = jnp.atleast_1d(jnp.asarray(t, jnp.float32))
    T = int(t_arr.shape[0])

    if N < 2:
        # Degenerate table (torch original would fail on time[1]); return last.
        out = jnp.broadcast_to(data[-1][None], (T,) + trailing)
        return out[0] if scalar_t else out

    # Lane-dense layout: (N, BF) padded to a multiple of 128 -> (N, R, 128).
    data2 = data.reshape(N, BF)
    if BF_pad != BF:
        data2 = jnp.pad(data2, ((0, 0), (0, BF_pad - BF)))
    data3 = data2.reshape(N, R, _LANES)

    # --- scalar index/weight math (wrapper side, f32 to avoid int overflow) ---
    # Unified contiguous pair: i0 = clip(floor(t/dt), 0, N-2), i1 = i0 + 1,
    # w = weight of data[i0] clipped to [0, 1]; oob-high (floor >= N-1) -> w = 0
    # so the out-of-range case returns data[N-1] exactly (torch behavior).
    dt = time[1] - time[0]
    pos = t_arr / dt
    i0f = jnp.floor(pos)                             # torch `//`
    oob_hi = i0f >= jnp.float32(N - 1)
    i0f_c = jnp.clip(i0f, 0.0, jnp.float32(N - 2))
    i0 = i0f_c.astype(jnp.int32)                     # (T,) int32 -> 1-D SMEM
    w_last = jnp.where(oob_hi, jnp.float32(0.0),
                       jnp.clip((i0f_c + 1.0) - pos, 0.0, 1.0))
    w_last = w_last.astype(jnp.float32)              # (T,) f32   -> 1-D SMEM

    # --- VMEM budgeting (generation-aware) ---
    capacity = _vmem_capacity_bytes()
    vmem_limit = int(max(32 << 20, capacity - (8 << 20)))
    if vmem_table_budget_bytes is None:
        # ~40% of physical VMEM: safe on v7x (64 MiB) even if the resident
        # input ends up double-buffered; ~51 MiB on v5e/v6e (128 MiB).
        vmem_table_budget_bytes = (capacity * 2) // 5

    r_pad = ((R + _SUBLANES - 1) // _SUBLANES) * _SUBLANES  # sublane padding
    table_vmem = N * r_pad * _LANES * itemsize
    out_row_vmem = r_pad * _LANES * itemsize
    fast_ok = (table_vmem <= vmem_table_budget_bytes and
               2 * table_vmem + 4 * _TQ * out_row_vmem + (2 << 20) <= vmem_limit)

    compiler_params = pltpu.CompilerParams(
        dimension_semantics=("parallel",),
        vmem_limit_bytes=vmem_limit,
    )

    if fast_ok:
        # ---------- fast path: table resident in VMEM, TQ queries / step ------
        TQ = _TQ
        T_pad = ((T + TQ - 1) // TQ) * TQ
        if T_pad != T:
            i0_p = jnp.pad(i0, (0, T_pad - T))                       # row 0 is valid
            w_p = jnp.pad(w_last, (0, T_pad - T), constant_values=1.0)
        else:
            i0_p, w_p = i0, w_last

        grid_spec = pltpu.PrefetchScalarGridSpec(
            num_scalar_prefetch=2,
            grid=(T_pad // TQ,),
            in_specs=[
                # Whole table, constant block index -> copied into VMEM once.
                pl.BlockSpec((N, R, _LANES),
                             lambda q, i0_ref, w_ref: (0, 0, 0)),
            ],
            out_specs=pl.BlockSpec((TQ, R, _LANES),
                                   lambda q, i0_ref, w_ref: (q, 0, 0)),
        )
        out = pl.pallas_call(
            functools.partial(_resident_kernel, tq=TQ),
            out_shape=jax.ShapeDtypeStruct((T_pad, R, _LANES), data.dtype),
            grid_spec=grid_spec,
            compiler_params=compiler_params,
        )(i0_p, w_p, data3)
        out = out[:T]
    else:
        # ---------- streaming path: per-query data-dependent two-row fetch ----
        # TODO(synk): split R onto a second grid axis (R_blk multiple of 8) when
        # 6 * R * 128 * itemsize exceeds the VMEM limit (very large feature dims).
        grid_spec = pltpu.PrefetchScalarGridSpec(
            num_scalar_prefetch=2,
            grid=(T,),
            in_specs=[
                pl.BlockSpec((1, R, _LANES),
                             lambda q, i0_ref, w_ref: (i0_ref[q], 0, 0)),
                pl.BlockSpec((1, R, _LANES),
                             lambda q, i0_ref, w_ref: (i0_ref[q] + 1, 0, 0)),
            ],
            out_specs=pl.BlockSpec((1, R, _LANES),
                                   lambda q, i0_ref, w_ref: (q, 0, 0)),
        )
        out = pl.pallas_call(
            _stream_kernel,
            out_shape=jax.ShapeDtypeStruct((T, R, _LANES), data.dtype),
            grid_spec=grid_spec,
            compiler_params=compiler_params,
        )(i0, w_last, data3, data3)

    out = out.reshape(T, BF_pad)[:, :BF].reshape((T,) + trailing)
    return out[0] if scalar_t else out


def _reference(t_arr, time, data):
    # Plain-JAX reference mirroring the torch forward (t >= 0).
    dt = time[1] - time[0]
    n = data.shape[0]

    def one(t):
        i0 = jnp.floor(t / dt).astype(jnp.int32)
        i1 = i0 + 1
        oob = i1 >= n
        i0c = jnp.where(oob, n - 1, i0)
        i1c = jnp.where(oob, n - 1, i1)
        w = jnp.where(oob, 1.0, i1.astype(jnp.float32) - t / dt)
        return w * data[i0c] + (1.0 - w) * data[i1c]

    return jax.vmap(one)(jnp.atleast_1d(t_arr))


if __name__ == "__main__":
    key = jax.random.PRNGKey(0)

    N, B, F = 8, 4, 32                     # time samples, minibatch, features
    dt = 0.01
    time = jnp.arange(N, dtype=jnp.float32) * dt                      # (N,)
    excitation_data = jax.random.normal(key, (N, B, F), jnp.float32)  # (N, B, F)

    # Batched queries: interior points, t=0, an (almost) exact grid point,
    # and an out-of-range query that must return the last sample.
    t_queries = jnp.array([0.0234, 0.0, 0.05, 0.061, 1.0], jnp.float32)

    ref = jax.block_until_ready(_reference(t_queries, time, excitation_data))

    # Fast path (table resident in VMEM).
    out_fast = jax.block_until_ready(
        excitation_linear_interp(t_queries, time, excitation_data))
    assert out_fast.shape == (t_queries.shape[0], B, F)
    assert jnp.allclose(out_fast, ref, atol=1e-5, rtol=1e-5), "fast path mismatch"
    assert jnp.allclose(out_fast[-1], excitation_data[-1], atol=1e-6), "oob branch wrong"

    # Streaming path (forced by zero table budget) must agree.
    out_stream = jax.block_until_ready(
        excitation_linear_interp(t_queries, time, excitation_data,
                                 vmem_table_budget_bytes=0))
    assert out_stream.shape == (t_queries.shape[0], B, F)
    assert jnp.allclose(out_stream, ref, atol=1e-5, rtol=1e-5), "stream path mismatch"
    assert jnp.allclose(out_stream[-1], excitation_data[-1], atol=1e-6), "oob branch wrong"

    # Scalar-t path (matches the torch forward signature).
    out_s = jax.block_until_ready(
        excitation_linear_interp(jnp.float32(0.0234), time, excitation_data))
    assert out_s.shape == (B, F)
    assert jnp.allclose(out_s, ref[0], atol=1e-5, rtol=1e-5)

    print("KERNEL_OK")
</pallas_src>

<mosaic_0001>
module attributes {stable_mosaic.version = 11 : i64} {
  func.func @_resident_kernel(%arg0: i32, %arg1: memref<8xi32, #tpu.memory_space<smem>>, %arg2: memref<8xf32, #tpu.memory_space<smem>>, %arg3: memref<8x1x128xf32, #tpu.memory_space<vmem>>, %arg4: memref<8x1x128xf32, #tpu.memory_space<vmem>>) attributes {dimension_semantics = [#tpu.dimension_semantics<parallel>], iteration_bounds = array<i64: 1>, scalar_prefetch = 2 : i64, scratch_operands = 0 : i64, tpu.core_type = #tpu.core_type<tc>, window_params = [{pipeline_mode = #tpu.pipeline_mode<synchronous>, transform_indices = @transform_0, window_bounds = array<i64: 8, 1, 128>}, {transform_indices = @transform_1, window_bounds = array<i64: 8, 1, 128>}]} {
    %c8_i32 = arith.constant 8 : i32
    %0 = arith.muli %arg0, %c8_i32 : i32
    %c0_i32 = arith.constant 0 : i32
    %1 = arith.addi %0, %c0_i32 : i32
    %2 = arith.index_cast %1 : i32 to index
    %3 = memref.load %arg1[%2] : memref<8xi32, #tpu.memory_space<smem>>
    %4 = arith.index_cast %1 : i32 to index
    %5 = memref.load %arg2[%4] : memref<8xf32, #tpu.memory_space<smem>>
    %6 = arith.index_cast %3 : i32 to index
    %c0 = arith.constant 0 : index
    %c0_0 = arith.constant 0 : index
    %7 = vector.load %arg3[%6, %c0, %c0_0] : memref<8x1x128xf32, #tpu.memory_space<vmem>>, vector<1x1x128xf32>
    %8 = vector.shape_cast %7 : vector<1x1x128xf32> to vector<1x128xf32>
    %c1_i32 = arith.constant 1 : i32
    %9 = arith.addi %3, %c1_i32 : i32
    %10 = arith.index_cast %9 : i32 to index
    %c0_1 = arith.constant 0 : index
    %c0_2 = arith.constant 0 : index
    %11 = vector.load %arg3[%10, %c0_1, %c0_2] : memref<8x1x128xf32, #tpu.memory_space<vmem>>, vector<1x1x128xf32>
    %12 = vector.shape_cast %11 : vector<1x1x128xf32> to vector<1x128xf32>
    %13 = vector.broadcast %5 : f32 to vector<1x128xf32>
    %14 = arith.mulf %13, %8 : vector<1x128xf32>
    %cst = arith.constant 1.000000e+00 : f32
    %15 = arith.subf %cst, %5 : f32
    %16 = vector.broadcast %15 : f32 to vector<1x128xf32>
    %17 = arith.mulf %16, %12 : vector<1x128xf32>
    %18 = arith.addf %14, %17 : vector<1x128xf32>
    %c0_3 = arith.constant 0 : index
    %c0_4 = arith.constant 0 : index
    %c0_5 = arith.constant 0 : index
    %19 = vector.load %arg4[%c0_3, %c0_4, %c0_5] : memref<8x1x128xf32, #tpu.memory_space<vmem>>, vector<1x1x128xf32>
    %20 = vector.shape_cast %19 : vector<1x1x128xf32> to vector<1x128xf32>
    %21 = vector.shape_cast %18 : vector<1x128xf32> to vector<1x1x128xf32>
    tpu.vector_store %arg4[%c0_3, %c0_4, %c0_5], %21 {strides = array<i32>} : memref<8x1x128xf32, #tpu.memory_space<vmem>>, vector<1x1x128xf32>,
    %c1_i32_6 = arith.constant 1 : i32
    %22 = arith.addi %0, %c1_i32_6 : i32
    %23 = arith.index_cast %22 : i32 to index
    %24 = memref.load %arg1[%23] : memref<8xi32, #tpu.memory_space<smem>>
    %25 = arith.index_cast %22 : i32 to index
    %26 = memref.load %arg2[%25] : memref<8xf32, #tpu.memory_space<smem>>
    %27 = arith.index_cast %24 : i32 to index
    %c0_7 = arith.constant 0 : index
    %c0_8 = arith.constant 0 : index
    %28 = vector.load %arg3[%27, %c0_7, %c0_8] : memref<8x1x128xf32, #tpu.memory_space<vmem>>, vector<1x1x128xf32>
    %29 = vector.shape_cast %28 : vector<1x1x128xf32> to vector<1x128xf32>
    %c1_i32_9 = arith.constant 1 : i32
    %30 = arith.addi %24, %c1_i32_9 : i32
    %31 = arith.index_cast %30 : i32 to index
    %c0_10 = arith.constant 0 : index
    %c0_11 = arith.constant 0 : index
    %32 = vector.load %arg3[%31, %c0_10, %c0_11] : memref<8x1x128xf32, #tpu.memory_space<vmem>>, vector<1x1x128xf32>
    %33 = vector.shape_cast %32 : vector<1x1x128xf32> to vector<1x128xf32>
    %34 = vector.broadcast %26 : f32 to vector<1x128xf32>
    %35 = arith.mulf %34, %29 : vector<1x128xf32>
    %cst_12 = arith.constant 1.000000e+00 : f32
    %36 = arith.subf %cst_12, %26 : f32
    %37 = vector.broadcast %36 : f32 to vector<1x128xf32>
    %38 = arith.mulf %37, %33 : vector<1x128xf32>
    %39 = arith.addf %35, %38 : vector<1x128xf32>
    %c1 = arith.constant 1 : index
    %c0_13 = arith.constant 0 : index
    %c0_14 = arith.constant 0 : index
    %40 = vector.load %arg4[%c1, %c0_13, %c0_14] : memref<8x1x128xf32, #tpu.memory_space<vmem>>, vector<1x1x128xf32>
    %41 = vector.shape_cast %40 : vector<1x1x128xf32> to vector<1x128xf32>
    %42 = vector.shape_cast %39 : vector<1x128xf32> to vector<1x1x128xf32>
    tpu.vector_store %arg4[%c1, %c0_13, %c0_14], %42 {strides = array<i32>} : memref<8x1x128xf32, #tpu.memory_space<vmem>>, vector<1x1x128xf32>,
    %c2_i32 = arith.constant 2 : i32
    %43 = arith.addi %0, %c2_i32 : i32
    %44 = arith.index_cast %43 : i32 to index
    %45 = memref.load %arg1[%44] : memref<8xi32, #tpu.memory_space<smem>>
    %46 = arith.index_cast %43 : i32 to index
    %47 = memref.load %arg2[%46] : memref<8xf32, #tpu.memory_space<smem>>
    %48 = arith.index_cast %45 : i32 to index
    %c0_15 = arith.constant 0 : index
    %c0_16 = arith.constant 0 : index
    %49 = vector.load %arg3[%48, %c0_15, %c0_16] : memref<8x1x128xf32, #tpu.memory_space<vmem>>, vector<1x1x128xf32>
    %50 = vector.shape_cast %49 : vector<1x1x128xf32> to vector<1x128xf32>
    %c1_i32_17 = arith.constant 1 : i32
    %51 = arith.addi %45, %c1_i32_17 : i32
    %52 = arith.index_cast %51 : i32 to index
    %c0_18 = arith.constant 0 : index
    %c0_19 = arith.constant 0 : index
    %53 = vector.load %arg3[%52, %c0_18, %c0_19] : memref<8x1x128xf32, #tpu.memory_space<vmem>>, vector<1x1x128xf32>
    %54 = vector.shape_cast %53 : vector<1x1x128xf32> to vector<1x128xf32>
    %55 = vector.broadcast %47 : f32 to vector<1x128xf32>
    %56 = arith.mulf %55, %50 : vector<1x128xf32>
    %cst_20 = arith.constant 1.000000e+00 : f32
    %57 = arith.subf %cst_20, %47 : f32
    %58 = vector.broadcast %57 : f32 to vector<1x128xf32>
    %59 = arith.mulf %58, %54 : vector<1x128xf32>
    %60 = arith.addf %56, %59 : vector<1x128xf32>
    %c2 = arith.constant 2 : index
    %c0_21 = arith.constant 0 : index
    %c0_22 = arith.constant 0 : index
    %61 = vector.load %arg4[%c2, %c0_21, %c0_22] : memref<8x1x128xf32, #tpu.memory_space<vmem>>, vector<1x1x128xf32>
    %62 = vector.shape_cast %61 : vector<1x1x128xf32> to vector<1x128xf32>
    %63 = vector.shape_cast %60 : vector<1x128xf32> to vector<1x1x128xf32>
    tpu.vector_store %arg4[%c2, %c0_21, %c0_22], %63 {strides = array<i32>} : memref<8x1x128xf32, #tpu.memory_space<vmem>>, vector<1x1x128xf32>,
    %c3_i32 = arith.constant 3 : i32
    %64 = arith.addi %0, %c3_i32 : i32
    %65 = arith.index_cast %64 : i32 to index
    %66 = memref.load %arg1[%65] : memref<8xi32, #tpu.memory_space<smem>>
    %67 = arith.index_cast %64 : i32 to index
    %68 = memref.load %arg2[%67] : memref<8xf32, #tpu.memory_space<smem>>
    %69 = arith.index_cast %66 : i32 to index
    %c0_23 = arith.constant 0 : index
    %c0_24 = arith.constant 0 : index
    %70 = vector.load %arg3[%69, %c0_23, %c0_24] : memref<8x1x128xf32, #tpu.memory_space<vmem>>, vector<1x1x128xf32>
    %71 = vector.shape_cast %70 : vector<1x1x128xf32> to vector<1x128xf32>
    %c1_i32_25 = arith.constant 1 : i32
    %72 = arith.addi %66, %c1_i32_25 : i32
    %73 = arith.index_cast %72 : i32 to index
    %c0_26 = arith.constant 0 : index
    %c0_27 = arith.constant 0 : index
    %74 = vector.load %arg3[%73, %c0_26, %c0_27] : memref<8x1x128xf32, #tpu.memory_space<vmem>>, vector<1x1x128xf32>
    %75 = vector.shape_cast %74 : vector<1x1x128xf32> to vector<1x128xf32>
    %76 = vector.broadcast %68 : f32 to vector<1x128xf32>
    %77 = arith.mulf %76, %71 : vector<1x128xf32>
    %cst_28 = arith.constant 1.000000e+00 : f32
    %78 = arith.subf %cst_28, %68 : f32
    %79 = vector.broadcast %78 : f32 to vector<1x128xf32>
    %80 = arith.mulf %79, %75 : vector<1x128xf32>
    %81 = arith.addf %77, %80 : vector<1x128xf32>
    %c3 = arith.constant 3 : index
    %c0_29 = arith.constant 0 : index
    %c0_30 = arith.constant 0 : index
    %82 = vector.load %arg4[%c3, %c0_29, %c0_30] : memref<8x1x128xf32, #tpu.memory_space<vmem>>, vector<1x1x128xf32>
    %83 = vector.shape_cast %82 : vector<1x1x128xf32> to vector<1x128xf32>
    %84 = vector.shape_cast %81 : vector<1x128xf32> to vector<1x1x128xf32>
    tpu.vector_store %arg4[%c3, %c0_29, %c0_30], %84 {strides = array<i32>} : memref<8x1x128xf32, #tpu.memory_space<vmem>>, vector<1x1x128xf32>,
    %c4_i32 = arith.constant 4 : i32
    %85 = arith.addi %0, %c4_i32 : i32
    %86 = arith.index_cast %85 : i32 to index
    %87 = memref.load %arg1[%86] : memref<8xi32, #tpu.memory_space<smem>>
    %88 = arith.index_cast %85 : i32 to index
    %89 = memref.load %arg2[%88] : memref<8xf32, #tpu.memory_space<smem>>
    %90 = arith.index_cast %87 : i32 to index
    %c0_31 = arith.constant 0 : index
    %c0_32 = arith.constant 0 : index
    %91 = vector.load %arg3[%90, %c0_31, %c0_32] : memref<8x1x128xf32, #tpu.memory_space<vmem>>, vector<1x1x128xf32>
    %92 = vector.shape_cast %91 : vector<1x1x128xf32> to vector<1x128xf32>
    %c1_i32_33 = arith.constant 1 : i32
    %93 = arith.addi %87, %c1_i32_33 : i32
    %94 = arith.index_cast %93 : i32 to index
    %c0_34 = arith.constant 0 : index
    %c0_35 = arith.constant 0 : index
    %95 = vector.load %arg3[%94, %c0_34, %c0_35] : memref<8x1x128xf32, #tpu.memory_space<vmem>>, vector<1x1x128xf32>
    %96 = vector.shape_cast %95 : vector<1x1x128xf32> to vector<1x128xf32>
    %97 = vector.broadcast %89 : f32 to vector<1x128xf32>
    %98 = arith.mulf %97, %92 : vector<1x128xf32>
    %cst_36 = arith.constant 1.000000e+00 : f32
    %99 = arith.subf %cst_36, %89 : f32
    %100 = vector.broadcast %99 : f32 to vector<1x128xf32>
    %101 = arith.mulf %100, %96 : vector<1x128xf32>
    %102 = arith.addf %98, %101 : vector<1x128xf32>
    %c4 = arith.constant 4 : index
    %c0_37 = arith.constant 0 : index
    %c0_38 = arith.constant 0 : index
    %103 = vector.load %arg4[%c4, %c0_37, %c0_38] : memref<8x1x128xf32, #tpu.memory_space<vmem>>, vector<1x1x128xf32>
    %104 = vector.shape_cast %103 : vector<1x1x128xf32> to vector<1x128xf32>
    %105 = vector.shape_cast %102 : vector<1x128xf32> to vector<1x1x128xf32>
    tpu.vector_store %arg4[%c4, %c0_37, %c0_38], %105 {strides = array<i32>} : memref<8x1x128xf32, #tpu.memory_space<vmem>>, vector<1x1x128xf32>,
    %c5_i32 = arith.constant 5 : i32
    %106 = arith.addi %0, %c5_i32 : i32
    %107 = arith.index_cast %106 : i32 to index
    %108 = memref.load %arg1[%107] : memref<8xi32, #tpu.memory_space<smem>>
    %109 = arith.index_cast %106 : i32 to index
    %110 = memref.load %arg2[%109] : memref<8xf32, #tpu.memory_space<smem>>
    %111 = arith.index_cast %108 : i32 to index
    %c0_39 = arith.constant 0 : index
    %c0_40 = arith.constant 0 : index
    %112 = vector.load %arg3[%111, %c0_39, %c0_40] : memref<8x1x128xf32, #tpu.memory_space<vmem>>, vector<1x1x128xf32>
    %113 = vector.shape_cast %112 : vector<1x1x128xf32> to vector<1x128xf32>
    %c1_i32_41 = arith.constant 1 : i32
    %114 = arith.addi %108, %c1_i32_41 : i32
    %115 = arith.index_cast %114 : i32 to index
    %c0_42 = arith.constant 0 : index
    %c0_43 = arith.constant 0 : index
    %116 = vector.load %arg3[%115, %c0_42, %c0_43] : memref<8x1x128xf32, #tpu.memory_space<vmem>>, vector<1x1x128xf32>
    %117 = vector.shape_cast %116 : vector<1x1x128xf32> to vector<1x128xf32>
    %118 = vector.broadcast %110 : f32 to vector<1x128xf32>
    %119 = arith.mulf %118, %113 : vector<1x128xf32>
    %cst_44 = arith.constant 1.000000e+00 : f32
    %120 = arith.subf %cst_44, %110 : f32
    %121 = vector.broadcast %120 : f32 to vector<1x128xf32>
    %122 = arith.mulf %121, %117 : vector<1x128xf32>
    %123 = arith.addf %119, %122 : vector<1x128xf32>
    %c5 = arith.constant 5 : index
    %c0_45 = arith.constant 0 : index
    %c0_46 = arith.constant 0 : index
    %124 = vector.load %arg4[%c5, %c0_45, %c0_46] : memref<8x1x128xf32, #tpu.memory_space<vmem>>, vector<1x1x128xf32>
    %125 = vector.shape_cast %124 : vector<1x1x128xf32> to vector<1x128xf32>
    %126 = vector.shape_cast %123 : vector<1x128xf32> to vector<1x1x128xf32>
    tpu.vector_store %arg4[%c5, %c0_45, %c0_46], %126 {strides = array<i32>} : memref<8x1x128xf32, #tpu.memory_space<vmem>>, vector<1x1x128xf32>,
    %c6_i32 = arith.constant 6 : i32
    %127 = arith.addi %0, %c6_i32 : i32
    %128 = arith.index_cast %127 : i32 to index
    %129 = memref.load %arg1[%128] : memref<8xi32, #tpu.memory_space<smem>>
    %130 = arith.index_cast %127 : i32 to index
    %131 = memref.load %arg2[%130] : memref<8xf32, #tpu.memory_space<smem>>
    %132 = arith.index_cast %129 : i32 to index
    %c0_47 = arith.constant 0 : index
    %c0_48 = arith.constant 0 : index
    %133 = vector.load %arg3[%132, %c0_47, %c0_48] : memref<8x1x128xf32, #tpu.memory_space<vmem>>, vector<1x1x128xf32>
    %134 = vector.shape_cast %133 : vector<1x1x128xf32> to vector<1x128xf32>
    %c1_i32_49 = arith.constant 1 : i32
    %135 = arith.addi %129, %c1_i32_49 : i32
    %136 = arith.index_cast %135 : i32 to index
    %c0_50 = arith.constant 0 : index
    %c0_51 = arith.constant 0 : index
    %137 = vector.load %arg3[%136, %c0_50, %c0_51] : memref<8x1x128xf32, #tpu.memory_space<vmem>>, vector<1x1x128xf32>
    %138 = vector.shape_cast %137 : vector<1x1x128xf32> to vector<1x128xf32>
    %139 = vector.broadcast %131 : f32 to vector<1x128xf32>
    %140 = arith.mulf %139, %134 : vector<1x128xf32>
    %cst_52 = arith.constant 1.000000e+00 : f32
    %141 = arith.subf %cst_52, %131 : f32
    %142 = vector.broadcast %141 : f32 to vector<1x128xf32>
    %143 = arith.mulf %142, %138 : vector<1x128xf32>
    %144 = arith.addf %140, %143 : vector<1x128xf32>
    %c6 = arith.constant 6 : index
    %c0_53 = arith.constant 0 : index
    %c0_54 = arith.constant 0 : index
    %145 = vector.load %arg4[%c6, %c0_53, %c0_54] : memref<8x1x128xf32, #tpu.memory_space<vmem>>, vector<1x1x128xf32>
    %146 = vector.shape_cast %145 : vector<1x1x128xf32> to vector<1x128xf32>
    %147 = vector.shape_cast %144 : vector<1x128xf32> to vector<1x1x128xf32>
    tpu.vector_store %arg4[%c6, %c0_53, %c0_54], %147 {strides = array<i32>} : memref<8x1x128xf32, #tpu.memory_space<vmem>>, vector<1x1x128xf32>,
    %c7_i32 = arith.constant 7 : i32
    %148 = arith.addi %0, %c7_i32 : i32
    %149 = arith.index_cast %148 : i32 to index
    %150 = memref.load %arg1[%149] : memref<8xi32, #tpu.memory_space<smem>>
    %151 = arith.index_cast %148 : i32 to index
    %152 = memref.load %arg2[%151] : memref<8xf32, #tpu.memory_space<smem>>
    %153 = arith.index_cast %150 : i32 to index
    %c0_55 = arith.constant 0 : index
    %c0_56 = arith.constant 0 : index
    %154 = vector.load %arg3[%153, %c0_55, %c0_56] : memref<8x1x128xf32, #tpu.memory_space<vmem>>, vector<1x1x128xf32>
    %155 = vector.shape_cast %154 : vector<1x1x128xf32> to vector<1x128xf32>
    %c1_i32_57 = arith.constant 1 : i32
    %156 = arith.addi %150, %c1_i32_57 : i32
    %157 = arith.index_cast %156 : i32 to index
    %c0_58 = arith.constant 0 : index
    %c0_59 = arith.constant 0 : index
    %158 = vector.load %arg3[%157, %c0_58, %c0_59] : memref<8x1x128xf32, #tpu.memory_space<vmem>>, vector<1x1x128xf32>
    %159 = vector.shape_cast %158 : vector<1x1x128xf32> to vector<1x128xf32>
    %160 = vector.broadcast %152 : f32 to vector<1x128xf32>
    %161 = arith.mulf %160, %155 : vector<1x128xf32>
    %cst_60 = arith.constant 1.000000e+00 : f32
    %162 = arith.subf %cst_60, %152 : f32
    %163 = vector.broadcast %162 : f32 to vector<1x128xf32>
    %164 = arith.mulf %163, %159 : vector<1x128xf32>
    %165 = arith.addf %161, %164 : vector<1x128xf32>
    %c7 = arith.constant 7 : index
    %c0_61 = arith.constant 0 : index
    %c0_62 = arith.constant 0 : index
    %166 = vector.load %arg4[%c7, %c0_61, %c0_62] : memref<8x1x128xf32, #tpu.memory_space<vmem>>, vector<1x1x128xf32>
    %167 = vector.shape_cast %166 : vector<1x1x128xf32> to vector<1x128xf32>
    %168 = vector.shape_cast %165 : vector<1x128xf32> to vector<1x1x128xf32>
    tpu.vector_store %arg4[%c7, %c0_61, %c0_62], %168 {strides = array<i32>} : memref<8x1x128xf32, #tpu.memory_space<vmem>>, vector<1x1x128xf32>,
    return
  }
  func.func @transform_0(%arg0: i32, %arg1: memref<8xi32, #tpu.memory_space<smem>>, %arg2: memref<8xf32, #tpu.memory_space<smem>>) -> (i32, i32, i32) {
    %c0_i32 = arith.constant 0 : i32
    %c0_i32_0 = arith.constant 0 : i32
    %c0_i32_1 = arith.constant 0 : i32
    %c0_i32_2 = arith.constant 0 : i32
    return %c0_i32, %c0_i32_0, %c0_i32_1 : i32, i32, i32
  }
  func.func @transform_1(%arg0: i32, %arg1: memref<8xi32, #tpu.memory_space<smem>>, %arg2: memref<8xf32, #tpu.memory_space<smem>>) -> (i32, i32, i32) {
    %c0_i32 = arith.constant 0 : i32
    %c0_i32_0 = arith.constant 0 : i32
    %c0_i32_1 = arith.constant 0 : i32
    return %arg0, %c0_i32, %c0_i32_0 : i32, i32, i32
  }
}

</mosaic_0001>

<llo_original>
// kernel: tpu_custom_call.1
$region0: #{tpu_custom_call.1}
  #allocation0 [shape = 'u32[]', space=smem, size = 0x4, offset = 0x4, fixed_abs, tag = 'smem constant byte address 0x4 - core index']
  #allocation1 [shape = 'u32[72,128]{1,0:T(1,128)}', space=vmem, size = 0x9000, scoped, tag = 'internal scratch']
  #allocation2 [shape = 's32[1]{0}', space=sflag, size = 0x4, scoped, tag = 'scoped memory for tpu_custom_call.1']
  #allocation3 [shape = 'u8[512]{0}', space=smem, size = 0x200, scoped, tag = 'prefetched SMEM operand 0']
  #allocation4 [shape = 'u8[512]{0}', space=smem, size = 0x200, scoped, tag = 'prefetched SMEM operand 1']
  %s0 = inlined_call_operand.hbm [shape: s32[8], index: 0, kind: input, shape index: {}]
  %s1 = inlined_call_operand.hbm [shape: f32[8], index: 1, kind: input, shape index: {}]
  %s2 = inlined_call_operand.hbm [shape: f32[8,1,128], index: 2, kind: input, shape index: {}]
  %s3 = inlined_call_operand.hbm [shape: f32[8,1,128], index: 3, kind: output, shape index: {}]
  %s4 = sld [smem:[#allocation0]]
  $region18: #{tpu_custom_call.1} parent=0
    _
  %s6 = ssub.s32 1, %s4
  %s7 = scalar_select 0, %s6, %s4
  %s9 = sshll.u32 %s0, 4
  %s10 = int_to_ptr.hbm [resolvable:$true] %s9
  %12 = dma.hbm_to_smem %s10, 16, [#allocation3], [#allocation2]
  %s14 = sshll.u32 %s1, 4
  %s15 = int_to_ptr.hbm [resolvable:$true] %s14
  %17 = dma.hbm_to_smem %s15, 16, [#allocation4], [#allocation2]
  %19 = dma.done [#allocation2], 32
  %20 = sfence
  $region1: #{tpu_custom_call.1} parent=0
    #allocation5 [shape = 'u8[4096]{0}', space=vmem, size = 0x1000, scoped, tag = 'input window, operand 2, single buffered']
    #allocation6 [shape = 's32[1]{0}', space=sflag, size = 0x4, scoped, tag = 'scoped memory for tpu_custom_call.1']
    #allocation7 [shape = 's32[1]{0}', space=sflag, size = 0x4, scoped, tag = 'scoped memory for tpu_custom_call.1']
    #allocation8 [shape = 'u8[4096]{0}', space=vmem, size = 0x1000, scoped, tag = 'output window, operand 0, single buffered']
    %21 = vsyncpa [#allocation6], 0
    %22 = vsyncpa [#allocation7], 0
    // Predicated region
    $region2: #{tpu_custom_call.1} parent=1 // pred_check
      _
    $region3: #{tpu_custom_call.1} parent=1 // pred_check_branch
      %24 = sbr.rel (0) target = $region5
    $region4: #{tpu_custom_call.1} parent=1 // pred_region
      %26 = vsyncadd [#allocation6], 0
      %s27 = sshll.u32 %s2, 4
      %s28 = int_to_ptr.hbm [resolvable:$true] %s27
      %s29 = sshll.u32 [#allocation5], 4
      %s30 = int_to_ptr.vmem [resolvable:$true] %s29
      %35 = dma.hbm_to_vmem [thread:$0]  %s28, 128, %s30, [#allocation6], 16, 16, 1
    $region5: #{tpu_custom_call.1} parent=1 // pred_fallthru
      _
    // Predicated region
    $region6: #{tpu_custom_call.1} parent=1 // pred_check
      _
    $region7: #{tpu_custom_call.1} parent=1 // pred_check_branch
      %37 = sbr.rel (0) target = $region9
    $region8: #{tpu_custom_call.1} parent=1 // pred_region
      %39 = dma.done [#allocation6], 128
    $region9: #{tpu_custom_call.1} parent=1 // pred_fallthru
      _
    %s40 = smul.u32 0, 8
    %s41 = sld [smem:[#allocation3 + %s40]]
    %s42 = sld [smem:[#allocation4 + %s40]]
    %s43 = scalar_lea.vmem [#allocation5], %s41
    %v44 = vld [vmem:[%s43] sm:$0x1]
    %s45 = sadd.s32 %s41, 1
    %s46 = scalar_lea.vmem [#allocation5], %s45
    %v47 = vld [vmem:[%s46] sm:$0x1]
    %v48 = vstv %s42
    %v49 = vmul.f32 %v48, %v44
    %s50 = ssub.f32 1.0, %s42
    %v51 = vstv %s50
    %v52 = vmul.f32 %v51, %v47
    %v53 = vadd.f32 %v49, %v52
    %54 = vst [vmem:[#allocation8] sm:$0x1] %v53
    %s55 = sadd.s32 %s40, 1
    %s56 = sld [smem:[#allocation3 + %s55]]
    %s57 = sld [smem:[#allocation4 + %s55]]
    %s58 = scalar_lea.vmem [#allocation5], %s56
    %v59 = vld [vmem:[%s58] sm:$0x1]
    %s60 = sadd.s32 %s56, 1
    %s61 = scalar_lea.vmem [#allocation5], %s60
    %v62 = vld [vmem:[%s61] sm:$0x1]
    %v63 = vstv %s57
    %v64 = vmul.f32 %v63, %v59
    %s65 = ssub.f32 1.0, %s57
    %v66 = vstv %s65
    %v67 = vmul.f32 %v66, %v62
    %v68 = vadd.f32 %v64, %v67
    %s69 = scalar_lea.vmem [#allocation8], 1
    %70 = vst [vmem:[%s69] sm:$0x1] %v68
    %s71 = sadd.s32 %s40, 2
    %s72 = sld [smem:[#allocation3 + %s71]]
    %s73 = sld [smem:[#allocation4 + %s71]]
    %s74 = scalar_lea.vmem [#allocation5], %s72
    %v75 = vld [vmem:[%s74] sm:$0x1]
    %s76 = sadd.s32 %s72, 1
    %s77 = scalar_lea.vmem [#allocation5], %s76
    %v78 = vld [vmem:[%s77] sm:$0x1]
    %v79 = vstv %s73
    %v80 = vmul.f32 %v79, %v75
    %s81 = ssub.f32 1.0, %s73
    %v82 = vstv %s81
    %v83 = vmul.f32 %v82, %v78
    %v84 = vadd.f32 %v80, %v83
    %s85 = scalar_lea.vmem [#allocation8], 2
    %86 = vst [vmem:[%s85] sm:$0x1] %v84
    %s87 = sadd.s32 %s40, 3
    %s88 = sld [smem:[#allocation3 + %s87]]
    %s89 = sld [smem:[#allocation4 + %s87]]
    %s90 = scalar_lea.vmem [#allocation5], %s88
    %v91 = vld [vmem:[%s90] sm:$0x1]
    %s92 = sadd.s32 %s88, 1
    %s93 = scalar_lea.vmem [#allocation5], %s92
    %v94 = vld [vmem:[%s93] sm:$0x1]
    %v95 = vstv %s89
    %v96 = vmul.f32 %v95, %v91
    %s97 = ssub.f32 1.0, %s89
    %v98 = vstv %s97
    %v99 = vmul.f32 %v98, %v94
    %v100 = vadd.f32 %v96, %v99
    %s101 = scalar_lea.vmem [#allocation8], 3
    %102 = vst [vmem:[%s101] sm:$0x1] %v100
    %s103 = sadd.s32 %s40, 4
    %s104 = sld [smem:[#allocation3 + %s103]]
    %s105 = sld [smem:[#allocation4 + %s103]]
    %s106 = scalar_lea.vmem [#allocation5], %s104
    %v107 = vld [vmem:[%s106] sm:$0x1]
    %s108 = sadd.s32 %s104, 1
    %s109 = scalar_lea.vmem [#allocation5], %s108
    %v110 = vld [vmem:[%s109] sm:$0x1]
    %v111 = vstv %s105
    %v112 = vmul.f32 %v111, %v107
    %s113 = ssub.f32 1.0, %s105
    %v114 = vstv %s113
    %v115 = vmul.f32 %v114, %v110
    %v116 = vadd.f32 %v112, %v115
    %s117 = scalar_lea.vmem [#allocation8], 4
    %118 = vst [vmem:[%s117] sm:$0x1] %v116
    %s119 = sadd.s32 %s40, 5
    %s120 = sld [smem:[#allocation3 + %s119]]
    %s121 = sld [smem:[#allocation4 + %s119]]
    %s122 = scalar_lea.vmem [#allocation5], %s120
    %v123 = vld [vmem:[%s122] sm:$0x1]
    %s124 = sadd.s32 %s120, 1
    %s125 = scalar_lea.vmem [#allocation5], %s124
    %v126 = vld [vmem:[%s125] sm:$0x1]
    %v127 = vstv %s121
    %v128 = vmul.f32 %v127, %v123
    %s129 = ssub.f32 1.0, %s121
    %v130 = vstv %s129
    %v131 = vmul.f32 %v130, %v126
    %v132 = vadd.f32 %v128, %v131
    %s133 = scalar_lea.vmem [#allocation8], 5
    %134 = vst [vmem:[%s133] sm:$0x1] %v132
    %s135 = sadd.s32 %s40, 6
    %s136 = sld [smem:[#allocation3 + %s135]]
    %s137 = sld [smem:[#allocation4 + %s135]]
    %s138 = scalar_lea.vmem [#allocation5], %s136
    %v139 = vld [vmem:[%s138] sm:$0x1]
    %s140 = sadd.s32 %s136, 1
    %s141 = scalar_lea.vmem [#allocation5], %s140
    %v142 = vld [vmem:[%s141] sm:$0x1]
    %v143 = vstv %s137
    %v144 = vmul.f32 %v143, %v139
    %s145 = ssub.f32 1.0, %s137
    %v146 = vstv %s145
    %v147 = vmul.f32 %v146, %v142
    %v148 = vadd.f32 %v144, %v147
    %s149 = scalar_lea.vmem [#allocation8], 6
    %150 = vst [vmem:[%s149] sm:$0x1] %v148
    %s151 = sadd.s32 %s40, 7
    %s152 = sld [smem:[#allocation3 + %s151]]
    %s153 = sld [smem:[#allocation4 + %s151]]
    %s154 = scalar_lea.vmem [#allocation5], %s152
    %v155 = vld [vmem:[%s154] sm:$0x1]
    %s156 = sadd.s32 %s152, 1
    %s157 = scalar_lea.vmem [#allocation5], %s156
    %v158 = vld [vmem:[%s157] sm:$0x1]
    %v159 = vstv %s153
    %v160 = vmul.f32 %v159, %v155
    %s161 = ssub.f32 1.0, %s153
    %v162 = vstv %s161
    %v163 = vmul.f32 %v162, %v158
    %v164 = vadd.f32 %v160, %v163
    %s165 = scalar_lea.vmem [#allocation8], 7
    %166 = vst [vmem:[%s165] sm:$0x1] %v164
    // Predicated region
    $region10: #{tpu_custom_call.1} parent=1 // pred_check
      _
    $region11: #{tpu_custom_call.1} parent=1 // pred_check_branch
      %168 = sbr.rel (0) target = $region13
    $region12: #{tpu_custom_call.1} parent=1 // pred_region
      %170 = vsyncadd [#allocation7], 0
      %s171 = sshll.u32 [#allocation8], 4
      %s172 = int_to_ptr.vmem [resolvable:$true] %s171
      %s173 = sshll.u32 %s3, 4
      %s174 = int_to_ptr.hbm [resolvable:$true] %s173
      %179 = dma.vmem_to_hbm [thread:$0]  %s172, 128, %s174, [#allocation7], 16, 16, 1
    $region13: #{tpu_custom_call.1} parent=1 // pred_fallthru
      _
    // Predicated region
    $region14: #{tpu_custom_call.1} parent=1 // pred_check
      _
    $region15: #{tpu_custom_call.1} parent=1 // pred_check_branch
      %181 = sbr.rel (0) target = $region17
    $region16: #{tpu_custom_call.1} parent=1 // pred_region
      %183 = dma.done [#allocation7], 128
    $region17: #{tpu_custom_call.1} parent=1 // pred_fallthru
      _
    %184 = vsyncpa [#allocation6], 1
    %185 = vsyncpa [#allocation7], 1

</llo_original>
